<compile_context>
chip_gen: v5e
topology: v5e:2x2
jax: 0.10.0
libtpu: 0.0.40
codegen_flags: <defaults>
</compile_context>

<pallas_src>
import functools

import jax
import jax.numpy as jnp
from jax.experimental import pallas as pl
from jax.experimental.pallas import tpu as pltpu

VMEM = pltpu.MemorySpace.VMEM
LANE = 128          # pad every feature/lane dim to a full vreg width
NEG = -1e30         # python literal -> folds into the kernel (no captured consts)


def _vmem_specs(n):
    return [pl.BlockSpec(memory_space=VMEM) for _ in range(n)]


def _round_up(d, m=LANE):
    return ((d + m - 1) // m) * m


def _pad2(a, rows, cols):
    """Zero-pad a 2-D array up to (rows, cols)."""
    return jnp.pad(a, ((0, rows - a.shape[0]), (0, cols - a.shape[1])))


# ---------------------------------------------------------------------------
# One fused kernel for the whole forward pass.
#   graph branch : GATConv(heads=1) -> ReLU -> global_max_pool
#   news branch  : first-node raw features -> lin0 -> ReLU
#   head         : concat -> lin1 -> ReLU -> lin2 -> log_softmax
# All intermediates stay in VMEM / vregs; one launch, lane-dense outputs.
# ---------------------------------------------------------------------------
def _fused_kernel(x_ref, news_ref, adj_ref, batch_ref,
                  wg_ref, asrc_ref, adst_ref, bg_ref,
                  w0_ref, b0_ref, w1a_ref, w1b_ref, b1_ref, w2_ref, b2_ref,
                  x1_ref, logp_ref, *, num_graphs, nclass):
    # ---------------- GATConv (heads=1) + ReLU ----------------
    h = jnp.dot(x_ref[...], wg_ref[...], preferred_element_type=jnp.float32)   # [N, HP]
    # per-node attention scalars, both on the MXU (no VPU/XLU lane-reduce)
    a_dst = jnp.dot(h, adst_ref[...], preferred_element_type=jnp.float32)      # [N, 1]
    a_src = jax.lax.dot_general(asrc_ref[...], h, (((1,), (1,)), ((), ())),
                                preferred_element_type=jnp.float32)            # [1, N]
    e = a_dst + a_src                                                          # e[i,j] = a_dst[i] + a_src[j]
    e = jnp.where(e > 0, e, 0.2 * e)                                           # LeakyReLU(0.2)
    adjf = adj_ref[...].astype(jnp.float32)                                    # int8 adjacency -> f32 mask
    e = jnp.where(adjf > 0.5, e, NEG)                                          # keep only edges j -> i (+ self loops)
    m = jnp.max(e, axis=1, keepdims=True)
    p = jnp.exp(e - m)
    inv = pl.reciprocal(jnp.sum(p, axis=1, keepdims=True), approx=True)        # EUP vrcp (free slot)
    alpha = p * inv                                                            # softmax per target node
    h = jnp.maximum(jnp.dot(alpha, h, preferred_element_type=jnp.float32)
                    + bg_ref[...], 0.0)                                        # [N, HP]  (F.relu)

    # ------------ global_max_pool as a fused epilogue (no [G,N,D] broadcast) --
    b_ids = batch_ref[...]                                                     # [N, 1] int32 (sublane axis)
    rows = []
    for g in range(num_graphs):                                                # G is small & static
        masked = jnp.where(b_ids == g, h, NEG)                                 # [N, HP]
        rows.append(jnp.max(masked, axis=0, keepdims=True))                    # [1, HP]
    x1 = jnp.concatenate(rows, axis=0)                                         # [G, HP]
    x1_ref[...] = x1                                                           # lane-dense store

    # ---------------- news branch: lin0 + ReLU ----------------
    news = jnp.maximum(
        jnp.dot(news_ref[...], w0_ref[...], preferred_element_type=jnp.float32)
        + b0_ref[...], 0.0)                                                    # [G, HP]

    # -------- concat -> lin1 -> ReLU  (lin1 pre-split along its input dim) ----
    hcat = jnp.maximum(
        jnp.dot(x1, w1a_ref[...], preferred_element_type=jnp.float32)
        + jnp.dot(news, w1b_ref[...], preferred_element_type=jnp.float32)
        + b1_ref[...], 0.0)                                                    # [G, HP]

    # -------- lin2 -> log_softmax over the first `nclass` (real) lanes --------
    logits = jnp.dot(hcat, w2_ref[...], preferred_element_type=jnp.float32) + b2_ref[...]
    lane = jax.lax.broadcasted_iota(jnp.int32, logits.shape, 1)
    logits = jnp.where(lane < nclass, logits, NEG)                             # mask padded lanes
    m2 = jnp.max(logits, axis=1, keepdims=True)
    lse = m2 + jnp.log(jnp.sum(jnp.exp(logits - m2), axis=1, keepdims=True))
    logp_ref[...] = logits - lse                                               # lane-dense [G, 128] store


def _fused_call(x_p, news_p, adj, batch_col, P, *, num_graphs, nclass):
    n, FP = x_p.shape
    HP = P['w_gat'].shape[1]
    CP = P['w2'].shape[1]
    operands = (x_p, news_p, adj, batch_col,
                P['w_gat'], P['att_src'], P['att_dst'], P['b_gat'],
                P['w0'], P['b0'], P['w1a'], P['w1b'], P['b1'], P['w2'], P['b2'])
    out_shape = (jax.ShapeDtypeStruct((num_graphs, HP), jnp.float32),
                 jax.ShapeDtypeStruct((num_graphs, CP), jnp.float32))
    bytes_accessed = sum(int(o.size) * o.dtype.itemsize for o in operands) \
        + 4 * num_graphs * (HP + CP)
    flops = 2 * (n * FP * HP + 2 * n * HP + n * n * HP
                 + num_graphs * FP * HP + 3 * num_graphs * HP * HP
                 + num_graphs * HP * CP)
    return pl.pallas_call(
        functools.partial(_fused_kernel, num_graphs=num_graphs, nclass=nclass),
        out_shape=out_shape,
        in_specs=_vmem_specs(len(operands)),
        out_specs=(pl.BlockSpec(memory_space=VMEM),
                   pl.BlockSpec(memory_space=VMEM)),
        compiler_params=pltpu.CompilerParams(vmem_limit_bytes=32 * 1024 * 1024),
        cost_estimate=pl.CostEstimate(flops=flops,
                                      transcendentals=n * n + n + num_graphs * CP,
                                      bytes_accessed=bytes_accessed),
    )(*operands)


# ---------------- deterministic parameter init (pre-padded to 128 lanes) ------
def init_params(key, nfeat, nhid, nclass=2):
    ks = jax.random.split(key, 10)

    def u(k, shape, fan_in):
        lim = 1.0 / jnp.sqrt(jnp.float32(fan_in))
        return jax.random.uniform(k, shape, jnp.float32, -lim, lim)

    FP, HP, CP = _round_up(nfeat), _round_up(nhid), _round_up(nclass)
    return dict(
        # GATConv(nfeat, nhid), heads=1 ; weights stored (in, out), zero-padded
        w_gat=_pad2(u(ks[0], (nfeat, nhid), nfeat), FP, HP),
        att_src=_pad2(u(ks[1], (1, nhid), nhid), 1, HP),      # row vector
        att_dst=_pad2(u(ks[2], (nhid, 1), nhid), HP, 1),      # column vector (MXU form)
        b_gat=jnp.zeros((1, HP), jnp.float32),
        # lin0: Linear(nfeat, nhid)
        w0=_pad2(u(ks[3], (nfeat, nhid), nfeat), FP, HP),
        b0=_pad2(u(ks[4], (1, nhid), nfeat), 1, HP),
        # lin1: Linear(2*nhid, nhid), pre-split along the input dimension
        w1a=_pad2(u(ks[5], (nhid, nhid), 2 * nhid), HP, HP),
        w1b=_pad2(u(ks[6], (nhid, nhid), 2 * nhid), HP, HP),
        b1=_pad2(u(ks[7], (1, nhid), 2 * nhid), 1, HP),
        # lin2: Linear(nhid, 2)
        w2=_pad2(u(ks[8], (nhid, nclass), nhid), HP, CP),
        b2=_pad2(u(ks[9], (1, nclass), nhid), 1, CP),
    )


# -------- full forward (tiny glue in plain JAX, hot path fused in Pallas) -----
@functools.partial(jax.jit, static_argnames=("num_graphs", "nhid", "nclass"))
def news_model_forward(params, x, edge_index, batch, *, num_graphs, nhid, nclass=2):
    n, _ = x.shape
    FP = params['w_gat'].shape[0]
    x_p = _pad2(x.astype(jnp.float32), n, FP)                 # lane-dense node features

    # dense adjacency mask (int8): adj[i, j] = 1 iff message edge j -> i (+ self loops)
    adj = jnp.zeros((n, n), jnp.int8)
    adj = adj.at[edge_index[1], edge_index[0]].set(1)
    adj = adj.at[jnp.arange(n), jnp.arange(n)].set(1)
    # TODO(synk): for large graphs, drop the dense N^2 adjacency and tile the GAT
    # attention with a flash-style online softmax + scalar-prefetched edge metadata.

    gids = jnp.arange(num_graphs)
    first_idx = jnp.argmax(batch[None, :] == gids[:, None], axis=1)
    news_raw = x_p[first_idx]                                 # [G, FP] first-node raw features
    batch_col = batch.astype(jnp.int32).reshape(n, 1)         # per-node graph id (sublane axis)

    x1_p, logp_p = _fused_call(x_p, news_raw, adj, batch_col, params,
                               num_graphs=num_graphs, nclass=nclass)
    x1 = x1_p[:, :nhid]
    logp = logp_p[:, :nclass]
    return logp, x1, logp                                     # matches torch forward: (x, x1, x)


# ---------------- pure-JAX reference for correctness checking ----------------
def reference_forward(params, x, edge_index, batch, num_graphs, nfeat, nhid, nclass=2):
    n = x.shape[0]
    adj = jnp.zeros((n, n), jnp.float32)
    adj = adj.at[edge_index[1], edge_index[0]].set(1.0)
    adj = adj.at[jnp.arange(n), jnp.arange(n)].set(1.0)
    h = x @ params['w_gat'][:nfeat, :nhid]
    a_dst = h @ params['att_dst'][:nhid, :]
    a_src = (h @ params['att_src'][:, :nhid].T).reshape(1, n)
    e = a_dst + a_src
    e = jnp.where(e > 0, e, 0.2 * e)
    e = jnp.where(adj > 0, e, -1e30)
    alpha = jax.nn.softmax(e, axis=1)
    h = jnp.maximum(alpha @ h + params['b_gat'][:, :nhid], 0.0)
    gids = jnp.arange(num_graphs)
    mask = batch[None, :] == gids[:, None]
    x1 = jnp.max(jnp.where(mask[:, :, None], h[None], -1e30), axis=1)
    first_idx = jnp.argmax(mask, axis=1)
    news = jnp.maximum(x[first_idx] @ params['w0'][:nfeat, :nhid]
                       + params['b0'][:, :nhid], 0.0)
    hcat = jnp.maximum(x1 @ params['w1a'][:nhid, :nhid]
                       + news @ params['w1b'][:nhid, :nhid]
                       + params['b1'][:, :nhid], 0.0)
    logits = hcat @ params['w2'][:nhid, :nclass] + params['b2'][:, :nclass]
    logp = jax.nn.log_softmax(logits, axis=1)
    return logp, x1, logp


if __name__ == "__main__":
    nfeat, nhid, nclass = 16, 32, 2
    nodes_per_graph, num_graphs = 4, 3
    n = nodes_per_graph * num_graphs

    key = jax.random.PRNGKey(0)
    kx, kp = jax.random.split(key)
    x = jax.random.normal(kx, (n, nfeat), jnp.float32)
    batch = jnp.repeat(jnp.arange(num_graphs, dtype=jnp.int32), nodes_per_graph)

    # deterministic edges: bidirectional ring inside each graph
    srcs, dsts = [], []
    for g in range(num_graphs):
        off = g * nodes_per_graph
        for i in range(nodes_per_graph):
            j = (i + 1) % nodes_per_graph
            srcs += [off + i, off + j]
            dsts += [off + j, off + i]
    edge_index = jnp.array([srcs, dsts], dtype=jnp.int32)

    params = init_params(kp, nfeat, nhid, nclass)

    out, x1, out2 = news_model_forward(params, x, edge_index, batch,
                                       num_graphs=num_graphs, nhid=nhid, nclass=nclass)
    jax.block_until_ready((out, x1, out2))

    assert out.shape == (num_graphs, nclass) and x1.shape == (num_graphs, nhid)
    # log_softmax rows must sum to ~1 in probability space
    assert bool(jnp.all(jnp.abs(jnp.sum(jnp.exp(out), axis=1) - 1.0) < 1e-4))
    # check against a pure-JAX reference of the same math (tolerance covers the
    # approximate-reciprocal softmax normalization in the kernel)
    ref_logp, ref_x1, _ = reference_forward(params, x, edge_index, batch,
                                            num_graphs, nfeat, nhid, nclass)
    assert bool(jnp.allclose(x1, ref_x1, atol=5e-2, rtol=0.0))
    assert bool(jnp.allclose(out, ref_logp, atol=5e-2, rtol=0.0))
    print("KERNEL_OK")
</pallas_src>

<mosaic_0001>
module attributes {stable_mosaic.version = 11 : i64} {
  func.func @_fused_kernel(%arg0: memref<12x128xf32, #tpu.memory_space<vmem>>, %arg1: memref<3x128xf32, #tpu.memory_space<vmem>>, %arg2: memref<12x12xi8, #tpu.memory_space<vmem>>, %arg3: memref<12x1xi32, #tpu.memory_space<vmem>>, %arg4: memref<128x128xf32, #tpu.memory_space<vmem>>, %arg5: memref<1x128xf32, #tpu.memory_space<vmem>>, %arg6: memref<128x1xf32, #tpu.memory_space<vmem>>, %arg7: memref<1x128xf32, #tpu.memory_space<vmem>>, %arg8: memref<128x128xf32, #tpu.memory_space<vmem>>, %arg9: memref<1x128xf32, #tpu.memory_space<vmem>>, %arg10: memref<128x128xf32, #tpu.memory_space<vmem>>, %arg11: memref<128x128xf32, #tpu.memory_space<vmem>>, %arg12: memref<1x128xf32, #tpu.memory_space<vmem>>, %arg13: memref<128x128xf32, #tpu.memory_space<vmem>>, %arg14: memref<1x128xf32, #tpu.memory_space<vmem>>, %arg15: memref<3x128xf32, #tpu.memory_space<vmem>>, %arg16: memref<3x128xf32, #tpu.memory_space<vmem>>) attributes {dimension_semantics = [], scalar_prefetch = 0 : i64, scratch_operands = 0 : i64, tpu.core_type = #tpu.core_type<tc>} {
    %c0 = arith.constant 0 : index
    %c0_0 = arith.constant 0 : index
    %0 = vector.load %arg0[%c0, %c0_0] : memref<12x128xf32, #tpu.memory_space<vmem>>, vector<12x128xf32>
    %c0_1 = arith.constant 0 : index
    %c0_2 = arith.constant 0 : index
    %1 = vector.load %arg4[%c0_1, %c0_2] : memref<128x128xf32, #tpu.memory_space<vmem>>, vector<128x128xf32>
    %cst = arith.constant dense<0.000000e+00> : vector<12x128xf32>
    %2 = tpu.matmul %0, %1, %cst {dimension_numbers = #tpu.dot_dimension_numbers<[1], [0], [0], [1], [0, 0, 1, 1], [], []>} : vector<12x128xf32>, vector<128x128xf32>, vector<12x128xf32> -> vector<12x128xf32>
    %c0_3 = arith.constant 0 : index
    %c0_4 = arith.constant 0 : index
    %3 = vector.load %arg6[%c0_3, %c0_4] : memref<128x1xf32, #tpu.memory_space<vmem>>, vector<128x1xf32>
    %cst_5 = arith.constant dense<0.000000e+00> : vector<12x1xf32>
    %4 = tpu.matmul %2, %3, %cst_5 {dimension_numbers = #tpu.dot_dimension_numbers<[1], [0], [0], [1], [0, 0, 1, 1], [], []>} : vector<12x128xf32>, vector<128x1xf32>, vector<12x1xf32> -> vector<12x1xf32>
    %c0_6 = arith.constant 0 : index
    %c0_7 = arith.constant 0 : index
    %5 = vector.load %arg5[%c0_6, %c0_7] : memref<1x128xf32, #tpu.memory_space<vmem>>, vector<1x128xf32>
    %cst_8 = arith.constant dense<0.000000e+00> : vector<1x12xf32>
    %6 = tpu.matmul %5, %2, %cst_8 {dimension_numbers = #tpu.dot_dimension_numbers<[1], [1], [0], [0], [0, 0, 1, 0], [], []>} : vector<1x128xf32>, vector<12x128xf32>, vector<1x12xf32> -> vector<1x12xf32>
    %7 = vector.broadcast %4 : vector<12x1xf32> to vector<12x12xf32>
    %8 = vector.broadcast %6 : vector<1x12xf32> to vector<12x12xf32>
    %9 = arith.addf %7, %8 : vector<12x12xf32>
    %cst_9 = arith.constant 0.000000e+00 : f32
    %10 = vector.broadcast %cst_9 : f32 to vector<12x12xf32>
    %11 = arith.cmpf ogt, %9, %10 : vector<12x12xf32>
    %cst_10 = arith.constant 2.000000e-01 : f32
    %12 = vector.broadcast %cst_10 : f32 to vector<12x12xf32>
    %13 = arith.mulf %12, %9 : vector<12x12xf32>
    %14 = arith.select %11, %9, %13 : vector<12x12xi1>, vector<12x12xf32>
    %c0_11 = arith.constant 0 : index
    %c0_12 = arith.constant 0 : index
    %15 = vector.load %arg2[%c0_11, %c0_12] : memref<12x12xi8, #tpu.memory_space<vmem>>, vector<12x12xi8>
    %16 = arith.sitofp %15 : vector<12x12xi8> to vector<12x12xf32>
    %cst_13 = arith.constant 5.000000e-01 : f32
    %17 = vector.broadcast %cst_13 : f32 to vector<12x12xf32>
    %18 = arith.cmpf ogt, %16, %17 : vector<12x12xf32>
    %cst_14 = arith.constant -1.000000e+30 : f32
    %19 = vector.broadcast %cst_14 : f32 to vector<12x12xf32>
    %20 = arith.select %18, %14, %19 : vector<12x12xi1>, vector<12x12xf32>
    %cst_15 = arith.constant dense<0xFF800000> : vector<12xf32>
    %21 = vector.multi_reduction <maximumf>, %20, %cst_15 [1] : vector<12x12xf32> to vector<12xf32>
    %22 = vector.shape_cast %21 : vector<12xf32> to vector<12x1xf32>
    %23 = vector.broadcast %22 : vector<12x1xf32> to vector<12x12xf32>
    %24 = arith.subf %20, %23 : vector<12x12xf32>
    %25 = math.exp %24 : vector<12x12xf32>
    %cst_16 = arith.constant dense<0.000000e+00> : vector<12xf32>
    %26 = vector.multi_reduction <add>, %25, %cst_16 [1] : vector<12x12xf32> to vector<12xf32>
    %27 = vector.shape_cast %26 : vector<12xf32> to vector<12x1xf32>
    %28 = tpu.reciprocal %27 {approx = true} : vector<12x1xf32> -> vector<12x1xf32>
    %29 = vector.broadcast %28 : vector<12x1xf32> to vector<12x12xf32>
    %30 = arith.mulf %25, %29 : vector<12x12xf32>
    %cst_17 = arith.constant dense<0.000000e+00> : vector<12x128xf32>
    %31 = tpu.matmul %30, %2, %cst_17 {dimension_numbers = #tpu.dot_dimension_numbers<[1], [0], [0], [1], [0, 0, 1, 1], [], []>} : vector<12x12xf32>, vector<12x128xf32>, vector<12x128xf32> -> vector<12x128xf32>
    %c0_18 = arith.constant 0 : index
    %c0_19 = arith.constant 0 : index
    %32 = vector.load %arg7[%c0_18, %c0_19] : memref<1x128xf32, #tpu.memory_space<vmem>>, vector<1x128xf32>
    %33 = vector.broadcast %32 : vector<1x128xf32> to vector<12x128xf32>
    %34 = arith.addf %31, %33 : vector<12x128xf32>
    %cst_20 = arith.constant 0.000000e+00 : f32
    %35 = vector.broadcast %cst_20 : f32 to vector<12x128xf32>
    %36 = arith.maximumf %34, %35 : vector<12x128xf32>
    %c0_21 = arith.constant 0 : index
    %c0_22 = arith.constant 0 : index
    %37 = vector.load %arg3[%c0_21, %c0_22] : memref<12x1xi32, #tpu.memory_space<vmem>>, vector<12x1xi32>
    %c0_i32 = arith.constant 0 : i32
    %38 = vector.broadcast %c0_i32 : i32 to vector<12x1xi32>
    %39 = arith.cmpi eq, %37, %38 : vector<12x1xi32>
    %cst_23 = arith.constant -1.000000e+30 : f32
    %40 = vector.shape_cast %39 : vector<12x1xi1> to vector<12x1xi1>
    %41 = vector.broadcast %40 : vector<12x1xi1> to vector<12x128xi1>
    %42 = vector.broadcast %cst_23 : f32 to vector<12x128xf32>
    %43 = arith.select %41, %36, %42 : vector<12x128xi1>, vector<12x128xf32>
    %cst_24 = arith.constant dense<0xFF800000> : vector<128xf32>
    %44 = vector.multi_reduction <maximumf>, %43, %cst_24 [0] : vector<12x128xf32> to vector<128xf32>
    %45 = vector.shape_cast %44 : vector<128xf32> to vector<1x128xf32>
    %c1_i32 = arith.constant 1 : i32
    %46 = vector.broadcast %c1_i32 : i32 to vector<12x1xi32>
    %47 = arith.cmpi eq, %37, %46 : vector<12x1xi32>
    %cst_25 = arith.constant -1.000000e+30 : f32
    %48 = vector.shape_cast %47 : vector<12x1xi1> to vector<12x1xi1>
    %49 = vector.broadcast %48 : vector<12x1xi1> to vector<12x128xi1>
    %50 = vector.broadcast %cst_25 : f32 to vector<12x128xf32>
    %51 = arith.select %49, %36, %50 : vector<12x128xi1>, vector<12x128xf32>
    %cst_26 = arith.constant dense<0xFF800000> : vector<128xf32>
    %52 = vector.multi_reduction <maximumf>, %51, %cst_26 [0] : vector<12x128xf32> to vector<128xf32>
    %53 = vector.shape_cast %52 : vector<128xf32> to vector<1x128xf32>
    %c2_i32 = arith.constant 2 : i32
    %54 = vector.broadcast %c2_i32 : i32 to vector<12x1xi32>
    %55 = arith.cmpi eq, %37, %54 : vector<12x1xi32>
    %cst_27 = arith.constant -1.000000e+30 : f32
    %56 = vector.shape_cast %55 : vector<12x1xi1> to vector<12x1xi1>
    %57 = vector.broadcast %56 : vector<12x1xi1> to vector<12x128xi1>
    %58 = vector.broadcast %cst_27 : f32 to vector<12x128xf32>
    %59 = arith.select %57, %36, %58 : vector<12x128xi1>, vector<12x128xf32>
    %cst_28 = arith.constant dense<0xFF800000> : vector<128xf32>
    %60 = vector.multi_reduction <maximumf>, %59, %cst_28 [0] : vector<12x128xf32> to vector<128xf32>
    %61 = vector.shape_cast %60 : vector<128xf32> to vector<1x128xf32>
    %62 = tpu.concatenate %45, %53, %61 in 0 : vector<1x128xf32>, vector<1x128xf32>, vector<1x128xf32> -> vector<3x128xf32>
    %c0_29 = arith.constant 0 : index
    %c0_30 = arith.constant 0 : index
    %63 = vector.load %arg15[%c0_29, %c0_30] : memref<3x128xf32, #tpu.memory_space<vmem>>, vector<3x128xf32>
    tpu.vector_store %arg15[%c0_29, %c0_30], %62 {strides = array<i32>} : memref<3x128xf32, #tpu.memory_space<vmem>>, vector<3x128xf32>,
    %c0_31 = arith.constant 0 : index
    %c0_32 = arith.constant 0 : index
    %64 = vector.load %arg1[%c0_31, %c0_32] : memref<3x128xf32, #tpu.memory_space<vmem>>, vector<3x128xf32>
    %c0_33 = arith.constant 0 : index
    %c0_34 = arith.constant 0 : index
    %65 = vector.load %arg8[%c0_33, %c0_34] : memref<128x128xf32, #tpu.memory_space<vmem>>, vector<128x128xf32>
    %cst_35 = arith.constant dense<0.000000e+00> : vector<3x128xf32>
    %66 = tpu.matmul %64, %65, %cst_35 {dimension_numbers = #tpu.dot_dimension_numbers<[1], [0], [0], [1], [0, 0, 1, 1], [], []>} : vector<3x128xf32>, vector<128x128xf32>, vector<3x128xf32> -> vector<3x128xf32>
    %c0_36 = arith.constant 0 : index
    %c0_37 = arith.constant 0 : index
    %67 = vector.load %arg9[%c0_36, %c0_37] : memref<1x128xf32, #tpu.memory_space<vmem>>, vector<1x128xf32>
    %68 = vector.broadcast %67 : vector<1x128xf32> to vector<3x128xf32>
    %69 = arith.addf %66, %68 : vector<3x128xf32>
    %cst_38 = arith.constant 0.000000e+00 : f32
    %70 = vector.broadcast %cst_38 : f32 to vector<3x128xf32>
    %71 = arith.maximumf %69, %70 : vector<3x128xf32>
    %c0_39 = arith.constant 0 : index
    %c0_40 = arith.constant 0 : index
    %72 = vector.load %arg10[%c0_39, %c0_40] : memref<128x128xf32, #tpu.memory_space<vmem>>, vector<128x128xf32>
    %cst_41 = arith.constant dense<0.000000e+00> : vector<3x128xf32>
    %73 = tpu.matmul %62, %72, %cst_41 {dimension_numbers = #tpu.dot_dimension_numbers<[1], [0], [0], [1], [0, 0, 1, 1], [], []>} : vector<3x128xf32>, vector<128x128xf32>, vector<3x128xf32> -> vector<3x128xf32>
    %c0_42 = arith.constant 0 : index
    %c0_43 = arith.constant 0 : index
    %74 = vector.load %arg11[%c0_42, %c0_43] : memref<128x128xf32, #tpu.memory_space<vmem>>, vector<128x128xf32>
    %cst_44 = arith.constant dense<0.000000e+00> : vector<3x128xf32>
    %75 = tpu.matmul %71, %74, %cst_44 {dimension_numbers = #tpu.dot_dimension_numbers<[1], [0], [0], [1], [0, 0, 1, 1], [], []>} : vector<3x128xf32>, vector<128x128xf32>, vector<3x128xf32> -> vector<3x128xf32>
    %76 = arith.addf %73, %75 : vector<3x128xf32>
    %c0_45 = arith.constant 0 : index
    %c0_46 = arith.constant 0 : index
    %77 = vector.load %arg12[%c0_45, %c0_46] : memref<1x128xf32, #tpu.memory_space<vmem>>, vector<1x128xf32>
    %78 = vector.broadcast %77 : vector<1x128xf32> to vector<3x128xf32>
    %79 = arith.addf %76, %78 : vector<3x128xf32>
    %cst_47 = arith.constant 0.000000e+00 : f32
    %80 = vector.broadcast %cst_47 : f32 to vector<3x128xf32>
    %81 = arith.maximumf %79, %80 : vector<3x128xf32>
    %c0_48 = arith.constant 0 : index
    %c0_49 = arith.constant 0 : index
    %82 = vector.load %arg13[%c0_48, %c0_49] : memref<128x128xf32, #tpu.memory_space<vmem>>, vector<128x128xf32>
    %cst_50 = arith.constant dense<0.000000e+00> : vector<3x128xf32>
    %83 = tpu.matmul %81, %82, %cst_50 {dimension_numbers = #tpu.dot_dimension_numbers<[1], [0], [0], [1], [0, 0, 1, 1], [], []>} : vector<3x128xf32>, vector<128x128xf32>, vector<3x128xf32> -> vector<3x128xf32>
    %c0_51 = arith.constant 0 : index
    %c0_52 = arith.constant 0 : index
    %84 = vector.load %arg14[%c0_51, %c0_52] : memref<1x128xf32, #tpu.memory_space<vmem>>, vector<1x128xf32>
    %85 = vector.broadcast %84 : vector<1x128xf32> to vector<3x128xf32>
    %86 = arith.addf %83, %85 : vector<3x128xf32>
    %87 = tpu.iota {dimensions = array<i32: 1>} : vector<3x128xi32>
    %c2_i32_53 = arith.constant 2 : i32
    %88 = vector.broadcast %c2_i32_53 : i32 to vector<3x128xi32>
    %89 = arith.cmpi slt, %87, %88 : vector<3x128xi32>
    %cst_54 = arith.constant -1.000000e+30 : f32
    %90 = vector.broadcast %cst_54 : f32 to vector<3x128xf32>
    %91 = arith.select %89, %86, %90 : vector<3x128xi1>, vector<3x128xf32>
    %cst_55 = arith.constant dense<0xFF800000> : vector<3xf32>
    %92 = vector.multi_reduction <maximumf>, %91, %cst_55 [1] : vector<3x128xf32> to vector<3xf32>
    %93 = vector.shape_cast %92 : vector<3xf32> to vector<3x1xf32>
    %94 = vector.broadcast %93 : vector<3x1xf32> to vector<3x128xf32>
    %95 = arith.subf %91, %94 : vector<3x128xf32>
    %96 = math.exp %95 : vector<3x128xf32>
    %cst_56 = arith.constant dense<0.000000e+00> : vector<3xf32>
    %97 = vector.multi_reduction <add>, %96, %cst_56 [1] : vector<3x128xf32> to vector<3xf32>
    %98 = vector.shape_cast %97 : vector<3xf32> to vector<3x1xf32>
    %99 = math.log %98 : vector<3x1xf32>
    %100 = arith.addf %93, %99 : vector<3x1xf32>
    %101 = vector.broadcast %100 : vector<3x1xf32> to vector<3x128xf32>
    %102 = arith.subf %91, %101 : vector<3x128xf32>
    %c0_57 = arith.constant 0 : index
    %c0_58 = arith.constant 0 : index
    %103 = vector.load %arg16[%c0_57, %c0_58] : memref<3x128xf32, #tpu.memory_space<vmem>>, vector<3x128xf32>
    tpu.vector_store %arg16[%c0_57, %c0_58], %102 {strides = array<i32>} : memref<3x128xf32, #tpu.memory_space<vmem>>, vector<3x128xf32>,
    return
  }
}

</mosaic_0001>

<llo_original>
// kernel: news_model_forward.1
$region0: #{news_model_forward.1}
  #allocation0 [shape = 'u32[]', space=smem, size = 0x4, offset = 0x4, fixed_abs, tag = 'smem constant byte address 0x4 - core index']
  #allocation1 [shape = 'u32[72,128]{1,0:T(1,128)}', space=vmem, size = 0x9000, scoped, tag = 'internal scratch']
  %s0 = inlined_call_operand.vmem [shape: f32[12,128], index: 0, kind: input, shape index: {}]
  %s1 = inlined_call_operand.vmem [shape: f32[3,128], index: 1, kind: input, shape index: {}]
  %s2 = inlined_call_operand.vmem [shape: s8[12,12], index: 2, kind: input, shape index: {}]
  %s3 = inlined_call_operand.vmem [shape: s32[12,1], index: 3, kind: input, shape index: {}]
  %s4 = inlined_call_operand.vmem [shape: f32[128,128], index: 4, kind: input, shape index: {}]
  %s5 = inlined_call_operand.vmem [shape: f32[1,128], index: 5, kind: input, shape index: {}]
  %s6 = inlined_call_operand.vmem [shape: f32[128,1], index: 6, kind: input, shape index: {}]
  %s7 = inlined_call_operand.vmem [shape: f32[1,128], index: 7, kind: input, shape index: {}]
  %s8 = inlined_call_operand.vmem [shape: f32[128,128], index: 8, kind: input, shape index: {}]
  %s9 = inlined_call_operand.vmem [shape: f32[1,128], index: 9, kind: input, shape index: {}]
  %s10 = inlined_call_operand.vmem [shape: f32[128,128], index: 10, kind: input, shape index: {}]
  %s11 = inlined_call_operand.vmem [shape: f32[128,128], index: 11, kind: input, shape index: {}]
  %s12 = inlined_call_operand.vmem [shape: f32[1,128], index: 12, kind: input, shape index: {}]
  %s13 = inlined_call_operand.vmem [shape: f32[128,128], index: 13, kind: input, shape index: {}]
  %s14 = inlined_call_operand.vmem [shape: f32[1,128], index: 14, kind: input, shape index: {}]
  %s15 = inlined_call_operand.hbm [shape: f32[3,128], index: 15, kind: output, shape index: {0}]
  %s16 = inlined_call_operand.vmem [shape: f32[3,128], index: 16, kind: output, shape index: {1}]
  %17 = xla_tuple %s15, %s16
  %s18 = sld [smem:[#allocation0]]
  $region78: #{news_model_forward.1} parent=0
    _
  %s20 = ssub.s32 1, %s18
  %s21 = scalar_select 0, %s20, %s18
  $region1: #{news_model_forward.1} parent=0
    #allocation2 [shape = 'u8[2048]{0}', space=vmem, size = 0x800, scoped, tag = 'output window, operand 0, single buffered']
    #allocation3 [shape = 's32[1]{0}', space=sflag, size = 0x4, scoped, tag = 'scoped memory for news_model_forward.1']
    %22 = vsyncpa [#allocation3], 0
    // Predicated region
    $region2: #{news_model_forward.1} parent=1 // pred_check
      _
    $region3: #{news_model_forward.1} parent=1 // pred_check_branch
      %24 = sbr.rel (0) target = $region5
    $region4: #{news_model_forward.1} parent=1 // pred_region
      _
    $region5: #{news_model_forward.1} parent=1 // pred_fallthru
      _
    // Predicated region
    $region6: #{news_model_forward.1} parent=1 // pred_check
      _
    $region7: #{news_model_forward.1} parent=1 // pred_check_branch
      %26 = sbr.rel (0) target = $region9
    $region8: #{news_model_forward.1} parent=1 // pred_region
      _
    $region9: #{news_model_forward.1} parent=1 // pred_fallthru
      _
    // Predicated region
    $region10: #{news_model_forward.1} parent=1 // pred_check
      _
    $region11: #{news_model_forward.1} parent=1 // pred_check_branch
      %28 = sbr.rel (0) target = $region13
    $region12: #{news_model_forward.1} parent=1 // pred_region
      _
    $region13: #{news_model_forward.1} parent=1 // pred_fallthru
      _
    // Predicated region
    $region14: #{news_model_forward.1} parent=1 // pred_check
      _
    $region15: #{news_model_forward.1} parent=1 // pred_check_branch
      %30 = sbr.rel (0) target = $region17
    $region16: #{news_model_forward.1} parent=1 // pred_region
      _
    $region17: #{news_model_forward.1} parent=1 // pred_fallthru
      _
    // Predicated region
    $region18: #{news_model_forward.1} parent=1 // pred_check
      _
    $region19: #{news_model_forward.1} parent=1 // pred_check_branch
      %32 = sbr.rel (0) target = $region21
    $region20: #{news_model_forward.1} parent=1 // pred_region
      _
    $region21: #{news_model_forward.1} parent=1 // pred_fallthru
      _
    // Predicated region
    $region22: #{news_model_forward.1} parent=1 // pred_check
      _
    $region23: #{news_model_forward.1} parent=1 // pred_check_branch
      %34 = sbr.rel (0) target = $region25
    $region24: #{news_model_forward.1} parent=1 // pred_region
      _
    $region25: #{news_model_forward.1} parent=1 // pred_fallthru
      _
    // Predicated region
    $region26: #{news_model_forward.1} parent=1 // pred_check
      _
    $region27: #{news_model_forward.1} parent=1 // pred_check_branch
      %36 = sbr.rel (0) target = $region29
    $region28: #{news_model_forward.1} parent=1 // pred_region
      _
    $region29: #{news_model_forward.1} parent=1 // pred_fallthru
      _
    // Predicated region
    $region30: #{news_model_forward.1} parent=1 // pred_check
      _
    $region31: #{news_model_forward.1} parent=1 // pred_check_branch
      %38 = sbr.rel (0) target = $region33
    $region32: #{news_model_forward.1} parent=1 // pred_region
      _
    $region33: #{news_model_forward.1} parent=1 // pred_fallthru
      _
    // Predicated region
    $region34: #{news_model_forward.1} parent=1 // pred_check
      _
    $region35: #{news_model_forward.1} parent=1 // pred_check_branch
      %40 = sbr.rel (0) target = $region37
    $region36: #{news_model_forward.1} parent=1 // pred_region
      _
    $region37: #{news_model_forward.1} parent=1 // pred_fallthru
      _
    // Predicated region
    $region38: #{news_model_forward.1} parent=1 // pred_check
      _
    $region39: #{news_model_forward.1} parent=1 // pred_check_branch
      %42 = sbr.rel (0) target = $region41
    $region40: #{news_model_forward.1} parent=1 // pred_region
      _
    $region41: #{news_model_forward.1} parent=1 // pred_fallthru
      _
    // Predicated region
    $region42: #{news_model_forward.1} parent=1 // pred_check
      _
    $region43: #{news_model_forward.1} parent=1 // pred_check_branch
      %44 = sbr.rel (0) target = $region45
    $region44: #{news_model_forward.1} parent=1 // pred_region
      _
    $region45: #{news_model_forward.1} parent=1 // pred_fallthru
      _
    // Predicated region
    $region46: #{news_model_forward.1} parent=1 // pred_check
      _
    $region47: #{news_model_forward.1} parent=1 // pred_check_branch
      %46 = sbr.rel (0) target = $region49
    $region48: #{news_model_forward.1} parent=1 // pred_region
      _
    $region49: #{news_model_forward.1} parent=1 // pred_fallthru
      _
    // Predicated region
    $region50: #{news_model_forward.1} parent=1 // pred_check
      _
    $region51: #{news_model_forward.1} parent=1 // pred_check_branch
      %48 = sbr.rel (0) target = $region53
    $region52: #{news_model_forward.1} parent=1 // pred_region
      _
    $region53: #{news_model_forward.1} parent=1 // pred_fallthru
      _
    // Predicated region
    $region54: #{news_model_forward.1} parent=1 // pred_check
      _
    $region55: #{news_model_forward.1} parent=1 // pred_check_branch
      %50 = sbr.rel (0) target = $region57
    $region56: #{news_model_forward.1} parent=1 // pred_region
      _
    $region57: #{news_model_forward.1} parent=1 // pred_fallthru
      _
    // Predicated region
    $region58: #{news_model_forward.1} parent=1 // pred_check
      _
    $region59: #{news_model_forward.1} parent=1 // pred_check_branch
      %52 = sbr.rel (0) target = $region61
    $region60: #{news_model_forward.1} parent=1 // pred_region
      _
    $region61: #{news_model_forward.1} parent=1 // pred_fallthru
      _
    %v53 = vld [vmem:[%s0] sm:$0xff]
    %v54 = vld [vmem:[%s0 + $0x8] sm:$0xf]
    %v55 = vld [vmem:[%s4] sm:$0xff]
    %v56 = vld [vmem:[%s4 + $0x8] sm:$0xff]
    %v57 = vld [vmem:[%s4 + $0x10] sm:$0xff]
    %v58 = vld [vmem:[%s4 + $0x18] sm:$0xff]
    %v59 = vld [vmem:[%s4 + $0x20] sm:$0xff]
    %v60 = vld [vmem:[%s4 + $0x28] sm:$0xff]
    %v61 = vld [vmem:[%s4 + $0x30] sm:$0xff]
    %v62 = vld [vmem:[%s4 + $0x38] sm:$0xff]
    %v63 = vld [vmem:[%s4 + $0x40] sm:$0xff]
    %v64 = vld [vmem:[%s4 + $0x48] sm:$0xff]
    %v65 = vld [vmem:[%s4 + $0x50] sm:$0xff]
    %v66 = vld [vmem:[%s4 + $0x58] sm:$0xff]
    %v67 = vld [vmem:[%s4 + $0x60] sm:$0xff]
    %v68 = vld [vmem:[%s4 + $0x68] sm:$0xff]
    %v69 = vld [vmem:[%s4 + $0x70] sm:$0xff]
    %v70 = vld [vmem:[%s4 + $0x78] sm:$0xff]
    %71 = vmatpush.msra.mxu0 %v70
    %72 = vmatpush.msra.mxu0 %v69
    %73 = vmatpush.msra.mxu0 %v68
    %74 = vmatpush.msra.mxu0 %v67
    %75 = vmatpush.msra.mxu0 %v66
    %76 = vmatpush.msra.mxu0 %v65
    %77 = vmatpush.msra.mxu0 %v64
    %78 = vmatpush.msra.mxu0 %v63
    %79 = vmatpush.msra.mxu0 %v62
    %80 = vmatpush.msra.mxu0 %v61
    %81 = vmatpush.msra.mxu0 %v60
    %82 = vmatpush.msra.mxu0 %v59
    %83 = vmatpush.msra.mxu0 %v58
    %84 = vmatpush.msra.mxu0 %v57
    %85 = vmatpush.msra.mxu0 %v56
    %86 = vmatpush.msra.mxu0 %v55
    %87 = vmatmul.f32.gmra.mxu0 %v53
    %v88 = vpop.f32.mrf.mxu0
    %v89 = vadd.f32 0.0, %v88
    %90 = vmatmul.f32.gmra.mxu0 %v54
    %v91 = vpop.f32.mrf.mxu0
    %v92 = vadd.f32 0.0, %v91
    %93 = vdwg.mxu0
    %v94 = vld [vmem:[%s6] sm:$0xff]
    %v95 = vld [vmem:[%s6 + $0x8] sm:$0xff]
    %v96 = vld [vmem:[%s6 + $0x10] sm:$0xff]
    %v97 = vld [vmem:[%s6 + $0x18] sm:$0xff]
    %v98 = vld [vmem:[%s6 + $0x20] sm:$0xff]
    %v99 = vld [vmem:[%s6 + $0x28] sm:$0xff]
    %v100 = vld [vmem:[%s6 + $0x30] sm:$0xff]
    %v101 = vld [vmem:[%s6 + $0x38] sm:$0xff]
    %v102 = vld [vmem:[%s6 + $0x40] sm:$0xff]
    %v103 = vld [vmem:[%s6 + $0x48] sm:$0xff]
    %v104 = vld [vmem:[%s6 + $0x50] sm:$0xff]
    %v105 = vld [vmem:[%s6 + $0x58] sm:$0xff]
    %v106 = vld [vmem:[%s6 + $0x60] sm:$0xff]
    %v107 = vld [vmem:[%s6 + $0x68] sm:$0xff]
    %v108 = vld [vmem:[%s6 + $0x70] sm:$0xff]
    %v109 = vld [vmem:[%s6 + $0x78] sm:$0xff]
    %110 = vmatpush.msra.mxu0 %v109
    %111 = vmatpush.msra.mxu0 %v108
    %112 = vmatpush.msra.mxu0 %v107
    %113 = vmatpush.msra.mxu0 %v106
    %114 = vmatpush.msra.mxu0 %v105
    %115 = vmatpush.msra.mxu0 %v104
    %116 = vmatpush.msra.mxu0 %v103
    %117 = vmatpush.msra.mxu0 %v102
    %118 = vmatpush.msra.mxu0 %v101
    %119 = vmatpush.msra.mxu0 %v100
    %120 = vmatpush.msra.mxu0 %v99
    %121 = vmatpush.msra.mxu0 %v98
    %122 = vmatpush.msra.mxu0 %v97
    %123 = vmatpush.msra.mxu0 %v96
    %124 = vmatpush.msra.mxu0 %v95
    %125 = vmatpush.msra.mxu0 %v94
    %126 = vmatmul.f32.gmra.mxu0 %v89
    %v127 = vpop.f32.mrf.mxu0
    %v128 = vadd.f32 0.0, %v127
    %129 = vmatmul.f32.gmra.mxu0 %v92
    %v130 = vpop.f32.mrf.mxu0
    %v131 = vadd.f32 0.0, %v130
    %132 = vdwg.mxu0
    %v133 = vld [vmem:[%s5] sm:$0x1]
    %134 = vmatpush.xpose.msra.mxu0 0.0
    %135 = vmatpush.xpose.msra.mxu0 0.0
    %136 = vmatpush.xpose.msra.mxu0 0.0
    %137 = vmatpush.xpose.msra.mxu0 0.0
    %138 = vmatpush.xpose.msra.mxu0 0.0
    %139 = vmatpush.xpose.msra.mxu0 0.0
    %140 = vmatpush.xpose.msra.mxu0 0.0
    %141 = vmatpush.xpose.msra.mxu0 0.0
    %142 = vmatpush.xpose.msra.mxu0 0.0
    %143 = vmatpush.xpose.msra.mxu0 0.0
    %144 = vmatpush.xpose.msra.mxu0 0.0
    %145 = vmatpush.xpose.msra.mxu0 0.0
    %146 = vmatpush.xpose.msra.mxu0 0.0
    %147 = vmatpush.xpose.msra.mxu0 0.0
    %148 = vmatpush.xpose.msra.mxu0 %v92
    %149 = vmatpush.xpose.msra.mxu0 %v89
    %150 = vmatmul.f32.gmra.mxu0 %v133
    %v151 = vpop.f32.mrf.mxu0
    %v152 = vadd.f32 0.0, %v151
    %153 = vdwg.mxu0
    %155 = vset.pattern.permute.xlu0 0
    %156 = vperm.xlu0 %155, %v128
    %v157 = vpop.permute.xlu0 %156
    %160 = vset.pattern.permute.xlu0 0
    %161 = vperm.xlu0 %160, %v131
    %v162 = vpop.permute.xlu0 %161
    %v164 = vperm.slane %v152, 0
    %v165 = vadd.f32 %v157, %v164
    %v166 = vadd.f32 %v162, %v164
    %vm167 = vcmp.gt.f32.partialorder %v165, 0.0
    %vm168 = vcmp.gt.f32.partialorder %v166, 0.0
    %v169 = vmul.f32 %v165, 0.2
    %v170 = vmul.f32 %v166, 0.2
    %v171 = vsel %vm167, %v165, %v169
    %v172 = vsel %vm168, %v166, %v170
    %v173 = vld [vmem:[%s2] sm:$0x3]
    %v174 = vld [vmem:[%s2 + $0x2] sm:$0x1]
    %v175 = vunpack.c.0.s8 %v173
    %v176 = vunpack.c.0.s8 %v174
    %v177 = vcvt.s32.f32 %v175
    %v178 = vcvt.s32.f32 %v176
    %vm179 = vcmp.gt.f32.partialorder %v177, 0.5
    %vm180 = vcmp.gt.f32.partialorder %v178, 0.5
    %v181 = vsel %vm179, %v171, -1e+30
    %v182 = vsel %vm180, %v172, -1e+30
    %vm183 = vcmask 97280
    %v184 = vsel %vm183, %v181, -inf
    %185 = vmax.xlane.f32.xlu0 %v184
    %v186 = vpop.xlane.xlu0 %185
    %vm187 = vcmask 93184
    %v188 = vsel %vm187, %v182, -inf
    %189 = vmax.xlane.f32.xlu0 %v188
    %v190 = vpop.xlane.xlu0 %189
    %v191 = vsub.f32 %v181, %v186
    %v192 = vsub.f32 %v182, %v190
    %v193 = vmul.f32 %v191, 1.442695
    %v194 = vpow.pop %v193
    %v195 = vmul.f32 %v192, 1.442695
    %v196 = vpow.pop %v195
    %v197 = vsel %vm183, %v194, 0.0
    %198 = vadd.xlane.f32.xlu0 %v197
    %v199 = vpop.xlane.xlu0 %198
    %v200 = vsel %vm187, %v196, 0.0
    %201 = vadd.xlane.f32.xlu0 %v200
    %v202 = vpop.xlane.xlu0 %201
    %v203 = vrcp.pop %v199
    %v204 = vrcp.pop %v202
    %v205 = vmul.f32 %v194, %v203
    %v206 = vmul.f32 %v196, %v204
    %v207 = vld [vmem:[%s7] sm:$0x1]
    %v209 = vperm.slane %v207, 0
    %v212 = vsel %vm183, %v205, 0
    %v215 = vsel %vm183, %v206, 0
    %vm217 = vcmask 1043456
    %v219 = vsel %vm217, %v92, 0
    %221 = vmatpush.msra.mxu0 0.0
    %222 = vmatpush.msra.mxu0 0.0
    %223 = vmatpush.msra.mxu0 0.0
    %224 = vmatpush.msra.mxu0 0.0
    %225 = vmatpush.msra.mxu0 0.0
    %226 = vmatpush.msra.mxu0 0.0
    %227 = vmatpush.msra.mxu0 0.0
    %228 = vmatpush.msra.mxu0 0.0
    %229 = vmatpush.msra.mxu0 0.0
    %230 = vmatpush.msra.mxu0 0.0
    %231 = vmatpush.msra.mxu0 0.0
    %232 = vmatpush.msra.mxu0 0.0
    %233 = vmatpush.msra.mxu0 0.0
    %234 = vmatpush.msra.mxu0 0.0
    %235 = vmatpush.msra.mxu0 %v219
    %236 = vmatpush.msra.mxu0 %v89
    %237 = vmatmul.f32.gmra.mxu0 %v212
    %v238 = vpop.f32.mrf.mxu0
    %v239 = vadd.f32 %v209, %v238
    %240 = vmatmul.f32.gmra.mxu0 %v215
    %v241 = vpop.f32.mrf.mxu0
    %v242 = vadd.f32 %v209, %v241
    %243 = vdwg.mxu0
    %v244 = vmax.f32 %v239, 0.0
    %v245 = vmax.f32 %v242, 0.0
    %v246 = vld [vmem:[%s3] sm:$0xff]
    %v247 = vld [vmem:[%s3 + $0x8] sm:$0xf]
    %vm248 = vcmp.eq.s32.totalorder %v246, 0
    %vm249 = vcmp.eq.s32.totalorder %v247, 0
    %v250 = vsel %vm248, 1, 0
    %v251 = vsel %vm249, 1, 0
    %252 = vset.pattern.permute.xlu0 0
    %253 = vperm.xlu0 %252, %v250
    %v254 = vpop.permute.xlu0 %253
    %255 = vset.pattern.permute.xlu0 0
    %256 = vperm.xlu0 %255, %v251
    %v257 = vpop.permute.xlu0 %256
    %vm258 = vcmp.eq.s32.totalorder %v254, 1
    %vm259 = vcmp.eq.s32.totalorder %v257, 1
    %v260 = vsel %vm258, %v244, -1e+30
    %v261 = vsel %vm259, %v245, -1e+30
    %v262 = vsel %vm217, %v261, -inf
    %v263 = vmax.f32 %v260, %v262
    %v264 = vrot.slane %v263, 4
    %v265 = vmax.f32 %v263, %v264
    %v266 = vrot.slane %v265, 2
    %v267 = vmax.f32 %v265, %v266
    %v268 = vrot.slane %v267, 1
    %v269 = vmax.f32 %v267, %v268
    %vm270 = vcmp.eq.s32.totalorder %v246, 1
    %vm271 = vcmp.eq.s32.totalorder %v247, 1
    %v272 = vsel %vm270, 1, 0
    %v273 = vsel %vm271, 1, 0
    %274 = vset.pattern.permute.xlu0 0
    %275 = vperm.xlu0 %274, %v272
    %v276 = vpop.permute.xlu0 %275
    %277 = vset.pattern.permute.xlu0 0
    %278 = vperm.xlu0 %277, %v273
    %v279 = vpop.permute.xlu0 %278
    %vm280 = vcmp.eq.s32.totalorder %v276, 1
    %vm281 = vcmp.eq.s32.totalorder %v279, 1
    %v282 = vsel %vm280, %v244, -1e+30
    %v283 = vsel %vm281, %v245, -1e+30
    %v284 = vsel %vm217, %v283, -inf
    %v285 = vmax.f32 %v282, %v284
    %v286 = vrot.slane %v285, 4
    %v287 = vmax.f32 %v285, %v286
    %v288 = vrot.slane %v287, 2
    %v289 = vmax.f32 %v287, %v288
    %v290 = vrot.slane %v289, 1
    %v291 = vmax.f32 %v289, %v290
    %vm292 = vcmp.eq.s32.totalorder %v246, 2
    %vm293 = vcmp.eq.s32.totalorder %v247, 2
    %v294 = vsel %vm292, 1, 0
    %v295 = vsel %vm293, 1, 0
    %296 = vset.pattern.permute.xlu0 0
    %297 = vperm.xlu0 %296, %v294
    %v298 = vpop.permute.xlu0 %297
    %299 = vset.pattern.permute.xlu0 0
    %300 = vperm.xlu0 %299, %v295
    %v301 = vpop.permute.xlu0 %300
    %vm302 = vcmp.eq.s32.totalorder %v298, 1
    %vm303 = vcmp.eq.s32.totalorder %v301, 1
    %v304 = vsel %vm302, %v244, -1e+30
    %v305 = vsel %vm303, %v245, -1e+30
    %v306 = vsel %vm217, %v305, -inf
    %v307 = vmax.f32 %v304, %v306
    %v308 = vrot.slane %v307, 4
    %v309 = vmax.f32 %v307, %v308
    %v310 = vrot.slane %v309, 2
    %v311 = vmax.f32 %v309, %v310
    %v312 = vrot.slane %v311, 1
    %v313 = vmax.f32 %v311, %v312
    %vm314 = vcmask 1040384
    %v315 = vsel %vm314, %v269, %v291
    %vm316 = vcmask 1041408
    %v317 = vsel %vm316, %v315, %v313
    %318 = vst [vmem:[#allocation2] sm:$0x7] %v317
    %v319 = vld [vmem:[%s1] sm:$0x7]
    %v320 = vld [vmem:[%s8] sm:$0xff]
    %v321 = vld [vmem:[%s8 + $0x8] sm:$0xff]
    %v322 = vld [vmem:[%s8 + $0x10] sm:$0xff]
    %v323 = vld [vmem:[%s8 + $0x18] sm:$0xff]
    %v324 = vld [vmem:[%s8 + $0x20] sm:$0xff]
    %v325 = vld [vmem:[%s8 + $0x28] sm:$0xff]
    %v326 = vld [vmem:[%s8 + $0x30] sm:$0xff]
    %v327 = vld [vmem:[%s8 + $0x38] sm:$0xff]
    %v328 = vld [vmem:[%s8 + $0x40] sm:$0xff]
    %v329 = vld [vmem:[%s8 + $0x48] sm:$0xff]
    %v330 = vld [vmem:[%s8 + $0x50] sm:$0xff]
    %v331 = vld [vmem:[%s8 + $0x58] sm:$0xff]
    %v332 = vld [vmem:[%s8 + $0x60] sm:$0xff]
    %v333 = vld [vmem:[%s8 + $0x68] sm:$0xff]
    %v334 = vld [vmem:[%s8 + $0x70] sm:$0xff]
    %v335 = vld [vmem:[%s8 + $0x78] sm:$0xff]
    %v336 = vld [vmem:[%s9] sm:$0x1]
    %v338 = vperm.slane %v336, 0
    %340 = vmatpush.msra.mxu0 %v335
    %341 = vmatpush.msra.mxu0 %v334
    %342 = vmatpush.msra.mxu0 %v333
    %343 = vmatpush.msra.mxu0 %v332
    %344 = vmatpush.msra.mxu0 %v331
    %345 = vmatpush.msra.mxu0 %v330
    %346 = vmatpush.msra.mxu0 %v329
    %347 = vmatpush.msra.mxu0 %v328
    %348 = vmatpush.msra.mxu0 %v327
    %349 = vmatpush.msra.mxu0 %v326
    %350 = vmatpush.msra.mxu0 %v325
    %351 = vmatpush.msra.mxu0 %v324
    %352 = vmatpush.msra.mxu0 %v323
    %353 = vmatpush.msra.mxu0 %v322
    %354 = vmatpush.msra.mxu0 %v321
    %355 = vmatpush.msra.mxu0 %v320
    %356 = vmatmul.f32.gmra.mxu0 %v319
    %v357 = vpop.f32.mrf.mxu0
    %v358 = vadd.f32 %v338, %v357
    %359 = vdwg.mxu0
    %v360 = vmax.f32 %v358, 0.0
    %v361 = vld [vmem:[%s10] sm:$0xff]
    %v362 = vld [vmem:[%s10 + $0x8] sm:$0xff]
    %v363 = vld [vmem:[%s10 + $0x10] sm:$0xff]
    %v364 = vld [vmem:[%s10 + $0x18] sm:$0xff]
    %v365 = vld [vmem:[%s10 + $0x20] sm:$0xff]
    %v366 = vld [vmem:[%s10 + $0x28] sm:$0xff]
    %v367 = vld [vmem:[%s10 + $0x30] sm:$0xff]
    %v368 = vld [vmem:[%s10 + $0x38] sm:$0xff]
    %v369 = vld [vmem:[%s10 + $0x40] sm:$0xff]
    %v370 = vld [vmem:[%s10 + $0x48] sm:$0xff]
    %v371 = vld [vmem:[%s10 + $0x50] sm:$0xff]
    %v372 = vld [vmem:[%s10 + $0x58] sm:$0xff]
    %v373 = vld [vmem:[%s10 + $0x60] sm:$0xff]
    %v374 = vld [vmem:[%s10 + $0x68] sm:$0xff]
    %v375 = vld [vmem:[%s10 + $0x70] sm:$0xff]
    %v376 = vld [vmem:[%s10 + $0x78] sm:$0xff]
    %v377 = vld [vmem:[%s11] sm:$0xff]
    %v378 = vld [vmem:[%s11 + $0x8] sm:$0xff]
    %v379 = vld [vmem:[%s11 + $0x10] sm:$0xff]
    %v380 = vld [vmem:[%s11 + $0x18] sm:$0xff]
    %v381 = vld [vmem:[%s11 + $0x20] sm:$0xff]
    %v382 = vld [vmem:[%s11 + $0x28] sm:$0xff]
    %v383 = vld [vmem:[%s11 + $0x30] sm:$0xff]
    %v384 = vld [vmem:[%s11 + $0x38] sm:$0xff]
    %v385 = vld [vmem:[%s11 + $0x40] sm:$0xff]
    %v386 = vld [vmem:[%s11 + $0x48] sm:$0xff]
    %v387 = vld [vmem:[%s11 + $0x50] sm:$0xff]
    %v388 = vld [vmem:[%s11 + $0x58] sm:$0xff]
    %v389 = vld [vmem:[%s11 + $0x60] sm:$0xff]
    %v390 = vld [vmem:[%s11 + $0x68] sm:$0xff]
    %v391 = vld [vmem:[%s11 + $0x70] sm:$0xff]
    %v392 = vld [vmem:[%s11 + $0x78] sm:$0xff]
    %393 = vmatpush.msra.mxu0 %v392
    %394 = vmatpush.msra.mxu0 %v391
    %395 = vmatpush.msra.mxu0 %v390
    %396 = vmatpush.msra.mxu0 %v389
    %397 = vmatpush.msra.mxu0 %v388
    %398 = vmatpush.msra.mxu0 %v387
    %399 = vmatpush.msra.mxu0 %v386
    %400 = vmatpush.msra.mxu0 %v385
    %401 = vmatpush.msra.mxu0 %v384
    %402 = vmatpush.msra.mxu0 %v383
    %403 = vmatpush.msra.mxu0 %v382
    %404 = vmatpush.msra.mxu0 %v381
    %405 = vmatpush.msra.mxu0 %v380
    %406 = vmatpush.msra.mxu0 %v379
    %407 = vmatpush.msra.mxu0 %v378
    %408 = vmatpush.msra.mxu0 %v377
    %409 = vmatmul.f32.gmra.mxu0 %v360
    %v410 = vpop.f32.mrf.mxu0
    %v411 = vadd.f32 0.0, %v410
    %412 = vdwg.mxu0
    %413 = vmatpush.msra.mxu0 %v376
    %414 = vmatpush.msra.mxu0 %v375
    %415 = vmatpush.msra.mxu0 %v374
    %416 = vmatpush.msra.mxu0 %v373
    %417 = vmatpush.msra.mxu0 %v372
    %418 = vmatpush.msra.mxu0 %v371
    %419 = vmatpush.msra.mxu0 %v370
    %420 = vmatpush.msra.mxu0 %v369
    %421 = vmatpush.msra.mxu0 %v368
    %422 = vmatpush.msra.mxu0 %v367
    %423 = vmatpush.msra.mxu0 %v366
    %424 = vmatpush.msra.mxu0 %v365
    %425 = vmatpush.msra.mxu0 %v364
    %426 = vmatpush.msra.mxu0 %v363
    %427 = vmatpush.msra.mxu0 %v362
    %428 = vmatpush.msra.mxu0 %v361
    %429 = vmatmul.f32.gmra.mxu0 %v317
    %v430 = vpop.f32.mrf.mxu0
    %v431 = vadd.f32 %v411, %v430
    %432 = vdwg.mxu0
    %v433 = vld [vmem:[%s12] sm:$0x1]
    %v435 = vperm.slane %v433, 0
    %v437 = vadd.f32 %v431, %v435
    %v438 = vmax.f32 %v437, 0.0
    %v439 = vld [vmem:[%s13] sm:$0xff]
    %v440 = vld [vmem:[%s13 + $0x8] sm:$0xff]
    %v441 = vld [vmem:[%s13 + $0x10] sm:$0xff]
    %v442 = vld [vmem:[%s13 + $0x18] sm:$0xff]
    %v443 = vld [vmem:[%s13 + $0x20] sm:$0xff]
    %v444 = vld [vmem:[%s13 + $0x28] sm:$0xff]
    %v445 = vld [vmem:[%s13 + $0x30] sm:$0xff]
    %v446 = vld [vmem:[%s13 + $0x38] sm:$0xff]
    %v447 = vld [vmem:[%s13 + $0x40] sm:$0xff]
    %v448 = vld [vmem:[%s13 + $0x48] sm:$0xff]
    %v449 = vld [vmem:[%s13 + $0x50] sm:$0xff]
    %v450 = vld [vmem:[%s13 + $0x58] sm:$0xff]
    %v451 = vld [vmem:[%s13 + $0x60] sm:$0xff]
    %v452 = vld [vmem:[%s13 + $0x68] sm:$0xff]
    %v453 = vld [vmem:[%s13 + $0x70] sm:$0xff]
    %v454 = vld [vmem:[%s13 + $0x78] sm:$0xff]
    %v455 = vld [vmem:[%s14] sm:$0x1]
    %v457 = vperm.slane %v455, 0
    %459 = vmatpush.msra.mxu0 %v454
    %460 = vmatpush.msra.mxu0 %v453
    %461 = vmatpush.msra.mxu0 %v452
    %462 = vmatpush.msra.mxu0 %v451
    %463 = vmatpush.msra.mxu0 %v450
    %464 = vmatpush.msra.mxu0 %v449
    %465 = vmatpush.msra.mxu0 %v448
    %466 = vmatpush.msra.mxu0 %v447
    %467 = vmatpush.msra.mxu0 %v446
    %468 = vmatpush.msra.mxu0 %v445
    %469 = vmatpush.msra.mxu0 %v444
    %470 = vmatpush.msra.mxu0 %v443
    %471 = vmatpush.msra.mxu0 %v442
    %472 = vmatpush.msra.mxu0 %v441
    %473 = vmatpush.msra.mxu0 %v440
    %474 = vmatpush.msra.mxu0 %v439
    %475 = vmatmul.f32.gmra.mxu0 %v438
    %v476 = vpop.f32.mrf.mxu0
    %v477 = vadd.f32 %v457, %v476
    %478 = vdwg.mxu0
    %v479 = vlaneseq
    %v480 = vand.u32 %v479, 127
    %vm481 = vcmp.lt.s32.totalorder %v480, 2
    %v482 = vsel %vm481, %v477, -1e+30
    %vm483 = vcmask 1042432
    %v484 = vsel %vm483, %v482, -inf
    %485 = vmax.xlane.f32.xlu0 %v484
    %v486 = vpop.xlane.xlu0 %485
    %v487 = vsub.f32 %v482, %v486
    %v488 = vmul.f32 %v487, 1.442695
    %v489 = vpow.pop %v488
    %v490 = vsel %vm483, %v489, 0.0
    %491 = vadd.xlane.f32.xlu0 %v490
    %v492 = vpop.xlane.xlu0 %491
    %v493 = vlog2.pop %v492
    %v494 = vmul.f32 %v493, 0.6931472
    %v495 = vadd.f32 %v486, %v494
    %v496 = vsub.f32 %v482, %v495
    %497 = vst [vmem:[%s16] sm:$0x7] %v496
    // Predicated region
    $region62: #{news_model_forward.1} parent=1 // pred_check
      _
    $region63: #{news_model_forward.1} parent=1 // pred_check_branch
      %499 = sbr.rel (0) target = $region65
    $region64: #{news_model_forward.1} parent=1 // pred_region
      %501 = vsyncadd [#allocation3], 0
      %s503 = sshll.u32 [#allocation2], 4
      %s504 = int_to_ptr.vmem [resolvable:$true] %s503
      %s505 = sshll.u32 %s15, 4
      %s506 = int_to_ptr.hbm [resolvable:$true] %s505
      %508 = dma.vmem_to_hbm [thread:$0]  %s504, 64, %s506, [#allocation3]
    $region65: #{news_model_forward.1} parent=1 // pred_fallthru
      _
    // Predicated region
    $region66: #{news_model_forward.1} parent=1 // pred_check
      _
    $region67: #{news_model_forward.1} parent=1 // pred_check_branch
      %510 = sbr.rel (0) target = $region69
    $region68: #{news_model_forward.1} parent=1 // pred_region
      _
    $region69: #{news_model_forward.1} parent=1 // pred_fallthru
      _
    // Predicated region
    $region70: #{news_model_forward.1} parent=1 // pred_check
      _
    $region71: #{news_model_forward.1} parent=1 // pred_check_branch
      %512 = sbr.rel (0) target = $region73
    $region72: #{news_model_forward.1} parent=1 // pred_region
      %514 = dma.done [#allocation3], 64
    $region73: #{news_model_forward.1} parent=1 // pred_fallthru
      _
    // Predicated region
    $region74: #{news_model_forward.1} parent=1 // pred_check
      _
    $region75: #{news_model_forward.1} parent=1 // pred_check_branch
      %516 = sbr.rel (0) target = $region77
    $region76: #{news_model_forward.1} parent=1 // pred_region
      _
    $region77: #{news_model_forward.1} parent=1 // pred_fallthru
      _
    %517 = vsyncpa [#allocation3], 1

</llo_original>
